<compile_context>
chip_gen: v7x
topology: tpu7x:2x2x1
jax: 0.10.0
libtpu: 0.0.40
codegen_flags: <defaults>
</compile_context>

<pallas_src>
import functools

import numpy as np
import jax
import jax.numpy as jnp
from jax import lax
from jax.experimental import pallas as pl
from jax.experimental.pallas import tpu as pltpu

# ----------------------------------------------------------------------------
# Module "hyper-parameters" (deterministic, set in-script — no checkpoint load)
# ----------------------------------------------------------------------------
L = [None, 5.0]
M = [None, 5]
ONES = True

IDX = [i for i in range(len(M)) if M[i] is None]            # passthrough columns
FOURIER = [(i, M[i]) for i in range(len(M)) if M[i] is not None]
IN_FEATURES = len(M)

_not_none = sum(m for m in M if m is not None)
_is_none = M.count(None)
OUT_FEATURES = (_not_none * 2 + IN_FEATURES) if _is_none == 0 else (_not_none * 2 + _is_none)
if ONES:
    OUT_FEATURES += 1


def _round_up(x, m):
    return ((x + m - 1) // m) * m


# ----------------------------------------------------------------------------
# Kernel: one (IN_FEATURES, TN) tile in -> one (OUT_FEATURES, TN) tile out.
# Feature axis on sublanes, point axis on the 128-lane axis (lane-dense).
# Row order matches the torch.hstack order of the reference forward():
#   [passthrough rows | cos_k (k=1..Mi) | sin_k (k=1..Mi)  (per fourier col) | ones]
# All constants are Python scalars or in-kernel iota -> nothing is captured.
# ----------------------------------------------------------------------------
def fourier_embed_kernel(grid_ref, out_ref):
    tn = out_ref.shape[1]
    rows = []

    # Passthrough rows (grid[:, idx]) — or the full grid if idx == [].
    if IDX:
        for i in IDX:
            rows.append(grid_ref[i:i + 1, :])
    else:
        rows.append(grid_ref[...])

    # Fourier features: phase = w * (k * x_i), k = 1..Mi (matches ref ordering).
    for i, Mi in FOURIER:
        w = float(2.0 * np.pi / L[i])
        x = grid_ref[i:i + 1, :]                                       # (1, TN)
        k = (lax.broadcasted_iota(jnp.int32, (Mi, tn), 0) + 1
             ).astype(jnp.float32)                                     # (Mi, TN), in-kernel
        kx = k * x                                                     # (Mi, TN)
        rows.append(jnp.cos(w * kx))
        rows.append(jnp.sin(w * kx))

    if ONES:
        rows.append(jnp.ones((1, tn), dtype=jnp.float32))

    # Assemble the full output tile in registers and issue one dense store.
    tile = jnp.concatenate(rows, axis=0)                               # (OUT_FEATURES, TN)
    out_ref[...] = tile.astype(out_ref.dtype)


# ----------------------------------------------------------------------------
# Wrapper.
#   feature_major=False : returns (N, OUT_FEATURES)  -- exact PyTorch semantics
#   feature_major=True  : returns (OUT_FEATURES, N)  -- no output transpose,
#                         ~2x less HBM traffic end-to-end; consumer must
#                         treat rows as features.
# ----------------------------------------------------------------------------
@functools.partial(jax.jit, static_argnames=("tn", "feature_major", "out_dtype"))
def fourier_embedding(grid, *, tn=65536, feature_major=False, out_dtype=jnp.float32):
    N, F = grid.shape
    assert F == IN_FEATURES, f"expected {IN_FEATURES} input features, got {F}"

    grid_t = grid.astype(jnp.float32).T                 # (IN_FEATURES, N), small vs output

    # Point tile: multiple of 128 lanes; capped so n_blocks >= 2 (v7x 2-TC split)
    # and no bigger than requested (v5e scoped-VMEM / v7x 64 MiB friendly).
    tn_cap = max(128, _round_up(tn, 128))
    half = max(128, _round_up(pl.cdiv(N, 2), 128))
    tn_eff = min(tn_cap, half)
    n_blocks = pl.cdiv(N, tn_eff)                       # ragged last block handled by Pallas

    out_t = pl.pallas_call(
        fourier_embed_kernel,
        out_shape=jax.ShapeDtypeStruct((OUT_FEATURES, N), out_dtype),
        grid_spec=pltpu.PrefetchScalarGridSpec(
            num_scalar_prefetch=0,
            grid=(n_blocks,),
            in_specs=[pl.BlockSpec((IN_FEATURES, tn_eff), lambda i: (0, i))],
            out_specs=pl.BlockSpec((OUT_FEATURES, tn_eff), lambda i: (0, i)),
        ),
        compiler_params=pltpu.CompilerParams(
            dimension_semantics=("parallel",),
            vmem_limit_bytes=48 << 20,                  # headroom for large tn on all gens
        ),
    )(grid_t)

    if feature_major:
        return out_t                                    # (OUT_FEATURES, N), lane-dense
    return out_t.T                                      # (N, OUT_FEATURES), reference layout


# ----------------------------------------------------------------------------
# Pure-JAX reference (mirrors the PyTorch forward exactly) for a sanity check
# ----------------------------------------------------------------------------
def fourier_embedding_ref(grid):
    grid = grid.astype(jnp.float32)
    if IDX:
        out = grid[:, jnp.asarray(IDX)]
    else:
        out = grid
    for i in range(len(M)):
        if M[i] is not None:
            Mi, Li = M[i], L[i]
            w = 2.0 * np.pi / Li
            k = jnp.arange(1, Mi + 1, dtype=jnp.float32).reshape(-1, 1)
            x = grid[:, i].reshape(1, -1)
            x = (k @ x).T
            out = jnp.hstack((out, jnp.cos(w * x), jnp.sin(w * x)))
    if ONES:
        out = jnp.hstack((out, jnp.ones_like(out[:, 0:1])))
    return out


if __name__ == "__main__":
    key = jax.random.PRNGKey(0)
    N = 1000  # not a multiple of the tile -> exercises the ragged boundary block
    grid = jax.random.uniform(key, (N, IN_FEATURES), dtype=jnp.float32) * 5.0

    ref = fourier_embedding_ref(grid)

    # Reference-layout path (matches the PyTorch module exactly).
    out = jax.block_until_ready(fourier_embedding(grid))
    assert out.shape == (N, OUT_FEATURES), (out.shape, OUT_FEATURES)
    assert np.allclose(np.asarray(out), np.asarray(ref), atol=5e-4, rtol=1e-4)

    # Feature-major fast path (no output transpose) — same values, transposed.
    out_fm = jax.block_until_ready(fourier_embedding(grid, feature_major=True))
    assert out_fm.shape == (OUT_FEATURES, N)
    assert np.allclose(np.asarray(out_fm).T, np.asarray(ref), atol=5e-4, rtol=1e-4)

    print("KERNEL_OK")
</pallas_src>

<mosaic_0001>
module attributes {stable_mosaic.version = 11 : i64} {
  func.func @fourier_embed_kernel(%arg0: i32, %arg1: memref<2x512xf32, #tpu.memory_space<vmem>>, %arg2: memref<12x512xf32, #tpu.memory_space<vmem>>) attributes {dimension_semantics = [#tpu.dimension_semantics<parallel>], iteration_bounds = array<i64: 2>, scalar_prefetch = 0 : i64, scratch_operands = 0 : i64, tpu.core_type = #tpu.core_type<tc>, window_params = [{transform_indices = @transform_0, window_bounds = array<i64: 2, 512>}, {transform_indices = @transform_1, window_bounds = array<i64: 12, 512>}]} {
    %c0 = arith.constant 0 : index
    %c0_0 = arith.constant 0 : index
    %0 = vector.load %arg1[%c0, %c0_0] : memref<2x512xf32, #tpu.memory_space<vmem>>, vector<1x512xf32>
    %c1 = arith.constant 1 : index
    %c0_1 = arith.constant 0 : index
    %1 = vector.load %arg1[%c1, %c0_1] : memref<2x512xf32, #tpu.memory_space<vmem>>, vector<1x512xf32>
    %2 = tpu.iota {dimensions = array<i32: 0>} : vector<5x512xi32>
    %c1_i32 = arith.constant 1 : i32
    %3 = vector.broadcast %c1_i32 : i32 to vector<5x512xi32>
    %4 = arith.addi %2, %3 : vector<5x512xi32>
    %5 = arith.sitofp %4 : vector<5x512xi32> to vector<5x512xf32>
    %6 = vector.broadcast %1 : vector<1x512xf32> to vector<5x512xf32>
    %7 = arith.mulf %5, %6 : vector<5x512xf32>
    %cst = arith.constant 1.2566371 : f32
    %8 = vector.broadcast %cst : f32 to vector<5x512xf32>
    %9 = arith.mulf %8, %7 : vector<5x512xf32>
    %10 = math.cos %9 : vector<5x512xf32>
    %cst_2 = arith.constant 1.2566371 : f32
    %11 = vector.broadcast %cst_2 : f32 to vector<5x512xf32>
    %12 = arith.mulf %11, %7 : vector<5x512xf32>
    %13 = math.sin %12 : vector<5x512xf32>
    %cst_3 = arith.constant 1.000000e+00 : f32
    %14 = vector.broadcast %cst_3 : f32 to vector<1x512xf32>
    %15 = tpu.concatenate %0, %10, %13, %14 in 0 : vector<1x512xf32>, vector<5x512xf32>, vector<5x512xf32>, vector<1x512xf32> -> vector<12x512xf32>
    %c0_4 = arith.constant 0 : index
    %c0_5 = arith.constant 0 : index
    %16 = vector.load %arg2[%c0_4, %c0_5] : memref<12x512xf32, #tpu.memory_space<vmem>>, vector<12x512xf32>
    tpu.vector_store %arg2[%c0_4, %c0_5], %15 {strides = array<i32>} : memref<12x512xf32, #tpu.memory_space<vmem>>, vector<12x512xf32>,
    return
  }
  func.func @transform_0(%arg0: i32) -> (i32, i32) {
    %c0_i32 = arith.constant 0 : i32
    %c0_i32_0 = arith.constant 0 : i32
    return %c0_i32, %arg0 : i32, i32
  }
  func.func @transform_1(%arg0: i32) -> (i32, i32) {
    %c0_i32 = arith.constant 0 : i32
    %c0_i32_0 = arith.constant 0 : i32
    return %c0_i32, %arg0 : i32, i32
  }
}

</mosaic_0001>

<llo_original>
// kernel: fourier_embedding.1
$region0: #{fourier_embedding.1}
  #allocation0 [shape = 'u32[]', space=smem, size = 0x4, offset = 0x4, fixed_abs, tag = 'smem constant byte address 0x4 - core index']
  #allocation1 [shape = 'u32[144,128]{1,0:T(1,128)}', space=vmem, size = 0x12000, scoped, tag = 'internal scratch']
  %s0 = inlined_call_operand.hbm [shape: f32[2,1000], index: 0, kind: input, shape index: {}]
  %s1 = inlined_call_operand.hbm [shape: f32[12,1000], index: 1, kind: output, shape index: {}]
  %s2 = sld [smem:[#allocation0]]
  $region41: #{fourier_embedding.1} parent=0
    _
  %s4 = ssub.s32 1, %s2
  %s5 = scalar_select 0, %s4, %s2
  $region1: #{fourier_embedding.1} parent=0
    #allocation2 [shape = 'u8[8192]{0}', space=vmem, size = 0x2000, scoped, tag = 'input window, operand 0']
    #allocation3 [shape = 's32[2]{0}', space=sflag, size = 0x8, scoped, tag = 'scoped memory for fourier_embedding.1']
    #allocation4 [shape = 's32[2]{0}', space=sflag, size = 0x8, scoped, tag = 'scoped memory for fourier_embedding.1']
    #allocation5 [shape = 'u8[65536]{0}', space=vmem, size = 0x10000, scoped, tag = 'output window, operand 0']
    %6 = vsyncpa [#allocation3], 0
    %s7 = scalar_lea.sflag [#allocation3], 1
    %8 = vsyncpa %s7, 0
    %9 = vsyncpa [#allocation4], 0
    %s10 = scalar_lea.sflag [#allocation4], 1
    %11 = vsyncpa %s10, 0
    loop: start=0, step=1, limit=4
    $region2: #{fourier_embedding.1} parent=1 // loop_pre_header
      _
    $region3: #{fourier_embedding.1} parent=1 // loop_header
      %s13 = sphi 0, %s17
      %p14 = scmp.ge.s32.totalorder %s13, 4
      %s23 = sphi 0, %s25
      %s26 = sphi 0, %s23
      %s27 = sphi 0, %s26
      %s43 = sphi 0, %s27
      %s49 = sphi 0, %s51
      %s52 = sphi 0, %s49
      %s53 = sphi 0, %s52
      %s69 = sphi 0, %s53
    $region4: #{fourier_embedding.1} parent=1 // loop_header_branch
      %16 = sbr.rel (%p14) target = $region8
    $region5: #{fourier_embedding.1} parent=1 // loop_body
      %s18 = ssub.s32 %s13, 1
      %s19 = ssub.s32 %s13, 2
      %s20 = sadd.s32 %s13, 1
      %s21 = ssub.s32 %s13, %s20
      %p22 = scmp.eq.s32.totalorder %s21, 0
      %s24 = sadd.s32 %s23, 1
      %s25 = scalar_select %p22, %s23, %s24
      %p28 = pneg %p22
      %p29 = scmp.eq.s32.totalorder %s13, 1
      %p30 = por %p28, %p29
      %p31 = scmp.ne.s32.totalorder %s23, %s26
      %p32 = scmp.eq.s32.totalorder %s13, 0
      %p33 = por %p31, %p32
      %p34 = scmp.ne.s32.totalorder %s23, %s26
      %p35 = scmp.eq.s32.totalorder %s18, 1
      %p36 = por %p34, %p35
      %p37 = scmp.ne.s32.totalorder %s26, %s27
      %p38 = scmp.eq.s32.totalorder %s18, 0
      %p39 = por %p37, %p38
      %p40 = scmp.ne.s32.totalorder %s26, %s27
      %p41 = scmp.eq.s32.totalorder %s19, 1
      %p42 = por %p40, %p41
      %p44 = scmp.ne.s32.totalorder %s27, %s43
      %p45 = scmp.eq.s32.totalorder %s19, 0
      %p46 = por %p44, %p45
      %s47 = ssub.s32 %s13, %s20
      %p48 = scmp.eq.s32.totalorder %s47, 0
      %s50 = sadd.s32 %s49, 1
      %s51 = scalar_select %p48, %s49, %s50
      %p54 = pneg %p48
      %p55 = scmp.eq.s32.totalorder %s13, 1
      %p56 = por %p54, %p55
      %p57 = scmp.ne.s32.totalorder %s49, %s52
      %p58 = scmp.eq.s32.totalorder %s13, 0
      %p59 = por %p57, %p58
      %p60 = scmp.ne.s32.totalorder %s49, %s52
      %p61 = scmp.eq.s32.totalorder %s18, 1
      %p62 = por %p60, %p61
      %p63 = scmp.ne.s32.totalorder %s52, %s53
      %p64 = scmp.eq.s32.totalorder %s18, 0
      %p65 = por %p63, %p64
      %p66 = scmp.ne.s32.totalorder %s52, %s53
      %p67 = scmp.eq.s32.totalorder %s19, 1
      %p68 = por %p66, %p67
      %p70 = scmp.ne.s32.totalorder %s53, %s69
      %p71 = scmp.eq.s32.totalorder %s19, 0
      %p72 = por %p70, %p71
      %p73 = scmp.le.s32.totalorder 1, %s13
      %p74 = scmp.lt.s32.totalorder %s13, 3
      %p75 = pnand %p73, %p74
      %p76 = pneg %p75
      // Predicated region
      $region9: #{fourier_embedding.1} parent=5 // pred_check
        _
      $region10: #{fourier_embedding.1} parent=5 // pred_check_branch
        %78 = sbr.rel (%p75) target = $region12
      $region11: #{fourier_embedding.1} parent=5 // pred_region
        %s79 = ssub.s32 %s13, 1
      $region12: #{fourier_embedding.1} parent=5 // pred_fallthru
        _
      %p80 = scmp.lt.s32.totalorder %s13, 2
      // Predicated region
      $region13: #{fourier_embedding.1} parent=5 // pred_check
        %p81 = pneg %p80
      $region14: #{fourier_embedding.1} parent=5 // pred_check_branch
        %83 = sbr.rel (%p81) target = $region16
      $region15: #{fourier_embedding.1} parent=5 // pred_region
        // Predicated region
        $region17: #{fourier_embedding.1} parent=15 // pred_check
          %p84 = pneg %p33
        $region18: #{fourier_embedding.1} parent=15 // pred_check_branch
          %86 = sbr.rel (%p84) target = $region20
        $region19: #{fourier_embedding.1} parent=15 // pred_region
          %s87 = sand.u32 %s23, 1
          %s88 = scalar_lea.sflag [#allocation3], %s87
          %s89 = sand.u32 %s23, 1
          %s90 = smul.addr %s89, 8
          %s91 = scalar_lea.vmem [#allocation2], %s90
          %s92 = smul.u32 4, %s13
          %s94 = ssub.s32 128, 128
          %95 = vsyncadd %s88, %s94
          %s96 = smul.addr %s92, 32
          %s97 = scalar_lea.hbm %s0, %s96
          %s99 = sshll.u32 %s91, 4
          %s100 = int_to_ptr.vmem [resolvable:$true] %s99
          %102 = dma.hbm_to_vmem [thread:$0]  %s97, 128, %s100, %s88
        $region20: #{fourier_embedding.1} parent=15 // pred_fallthru
          _
      $region16: #{fourier_embedding.1} parent=5 // pred_fallthru
        _
      %p103 = scmp.le.s32.totalorder 1, %s13
      %p104 = scmp.lt.s32.totalorder %s13, 3
      %p105 = pnand %p103, %p104
      %p106 = pneg %p105
      // Predicated region
      $region21: #{fourier_embedding.1} parent=5 // pred_check
        _
      $region22: #{fourier_embedding.1} parent=5 // pred_check_branch
        %108 = sbr.rel (%p105) target = $region24
      $region23: #{fourier_embedding.1} parent=5 // pred_region
        %s109 = ssub.s32 %s13, 1
        %s110 = sand.u32 %s26, 1
        %s111 = scalar_lea.sflag [#allocation3], %s110
        %s112 = sand.u32 %s26, 1
        %s113 = smul.addr %s112, 8
        %s114 = scalar_lea.vmem [#allocation2], %s113
        // Predicated region
        $region25: #{fourier_embedding.1} parent=23 // pred_check
          %p115 = pneg %p39
        $region26: #{fourier_embedding.1} parent=23 // pred_check_branch
          %117 = sbr.rel (%p115) target = $region28
        $region27: #{fourier_embedding.1} parent=23 // pred_region
          %118 = dma.done %s111, 128
        $region28: #{fourier_embedding.1} parent=23 // pred_fallthru
          _
        %s119 = sand.u32 %s26, 1
        %s120 = scalar_lea.sflag [#allocation3], %s119
        %s121 = sand.u32 %s26, 1
        %s122 = smul.addr %s121, 8
        %s123 = scalar_lea.vmem [#allocation2], %s122
        %p124 = pneg %p39
        %p125 = pneg %p36
        %p126 = pneg %p65
        %p127 = pneg %p62
        %s128 = sand.u32 %s52, 1
        %s129 = scalar_lea.sflag [#allocation4], %s128
        %s130 = sand.u32 %s52, 1
        %s131 = smul.addr %s130, 64
        %s132 = scalar_lea.vmem [#allocation5], %s131
        %s133 = smul.u32 4, %s18
        %s134 = smul.u32 4, %s18
        %v135 = vld [vmem:[%s114] ss:$2 sm:$0xf]
        %s136 = scalar_lea.vmem %s114, 1 [#allocation2]
        %v137 = vld [vmem:[%s136] ss:$2 sm:$0xf]
        %v138 = vlaneseq
        %v139 = vshrl.u32 %v138, 7
        %v140 = vadd.s32 %v139, 1
        %v141 = vcvt.s32.f32 %v140
        %v143 = vlaneseq
        %v144 = vshrl.u32 %v143, 7
        %v145 = vsub.s32 0, %v144
        %v146 = vrot.slane %v137, %v145
        %v147 = vlaneseq
        %v148 = vshrl.u32 %v147, 7
        %v149 = vsub.s32 1, %v148
        %v150 = vrot.slane %v137, %v149
        %v151 = vlaneseq
        %v152 = vshrl.u32 %v151, 7
        %v153 = vsub.s32 2, %v152
        %v154 = vrot.slane %v137, %v153
        %v155 = vlaneseq
        %v156 = vshrl.u32 %v155, 7
        %v157 = vsub.s32 3, %v156
        %v158 = vrot.slane %v137, %v157
        %v163 = vmul.f32 %v141, %v146
        %v164 = vmul.f32 %v141, %v150
        %v165 = vmul.f32 %v141, %v154
        %v166 = vmul.f32 %v141, %v158
        %v167 = vmul.f32 %v163, 1.2566371
        %v168 = vmul.f32 %v164, 1.2566371
        %v169 = vmul.f32 %v165, 1.2566371
        %v170 = vmul.f32 %v166, 1.2566371
        %v171 = vand.u32 2147483647, %v167
        %vm172 = vcmp.le.f32.partialorder %v171, 0.7853982
        %vm173 = vcmp.lt.s32.totalorder %v167, 0
        %v174 = vand.u32 %v167, 2139095040
        %v175 = vshrl.u32 %v174, 23
        %v176 = vsub.s32 %v175, 127
        %v177 = vand.u32 2147483647, %v167
        %v178 = vand.u32 %v177, 8388607
        %v179 = vor.u32 %v178, 8388608
        %v180 = vsub.s32 0, %v179
        %v181 = vadd.s32 %v176, 1
        %vm182 = vcmp.gt.s32.totalorder %v181, 0
        %v183 = vsel %vm182, %v181, 0
        %v184 = vshrl.u32 %v183, 5
        %v185 = vand.u32 %v183, 31
        %v186 = vsub.s32 32, %v185
        %v187 = vshrl.u32 683565275, %v186
        %v188 = vshll.u32 683565275, %v185
        %v189 = vshrl.u32 2475754826, %v186
        %v190 = vor.u32 %v188, %v189
        %v191 = vshll.u32 2475754826, %v185
        %v192 = vshrl.u32 2131351028, %v186
        %v193 = vor.u32 %v191, %v192
        %v194 = vshll.u32 2131351028, %v185
        %v195 = vshrl.u32 2102212464, %v186
        %v196 = vor.u32 %v194, %v195
        %v197 = vshll.u32 2102212464, %v185
        %v198 = vshrl.u32 920167782, %v186
        %v199 = vor.u32 %v197, %v198
        %v200 = vshll.u32 920167782, %v185
        %v201 = vshrl.u32 1326507024, %v186
        %v202 = vor.u32 %v200, %v201
        %vm203 = vcmp.lt.s32.totalorder %v184, 1
        %vm204 = vcmp.lt.s32.totalorder %v184, 2
        %vm205 = vcmp.lt.s32.totalorder %v184, 3
        %vm206 = vcmp.lt.s32.totalorder %v184, 4
        %v207 = vsel %vm203, %v187, %v190
        %v208 = vsel %vm206, %v196, 2102212464
        %v209 = vsel %vm205, %v193, %v208
        %v210 = vsel %vm204, %v207, %v209
        %v211 = vsel %vm203, %v190, %v193
        %v212 = vsel %vm206, %v199, 920167782
        %v213 = vsel %vm205, %v196, %v212
        %v214 = vsel %vm204, %v211, %v213
        %v215 = vsel %vm203, %v193, %v196
        %v216 = vsel %vm206, %v202, 1326507024
        %v217 = vsel %vm205, %v199, %v216
        %v218 = vsel %vm204, %v215, %v217
        %v219 = vshll.u32 %v179, 8
        %v220 = vmul.u32.u64.compose %v219, %v218
        %v221 = vextract.low.u32 %v220
        %v222 = vextract.high.u32 %v220
        %v223 = vmul.u32.u64.compose %v219, %v214
        %v224 = vextract.low.u32 %v223
        %v225 = vextract.high.u32 %v223
        %v226 = vmul.u32 %v219, %v210
        %v227 = vadd.s32 %v222, %v224
        %vm228 = vc.u32 %v222, %v224
        %v229 = vadd.s32 %v225, 1
        %v230 = vsel %vm228, %v229, %v225
        %v231 = vadd.s32 %v226, %v230
        %v232 = vadd.s32 %v231, 536870912
        %v233 = vshrl.u32 %v232, 30
        %v234 = vshll.u32 %v233, 30
        %v235 = vsub.s32 %v231, %v234
        %vm236 = vcmp.lt.s32.totalorder %v235, 0
        %v237 = vsub.s32 0, %v235
        %v238 = vsel %vm236, %v237, %v235
        %v239 = vclz %v238
        %v240 = vsub.s32 %v239, 2
        %vm241 = vcmp.gt.s32.totalorder 0, %v240
        %v242 = vsel %vm241, 0, %v240
        %v243 = vsub.s32 32, %v242
        %v244 = vshll.u32 %v235, %v242
        %v245 = vshrl.u32 %v227, %v243
        %v246 = vor.u32 %v244, %v245
        %v247 = vsub.s32 4294967266, %v242
        %v248 = vadd.s32 %v247, 127
        %v249 = vshll.u32 %v248, 23
        %v250 = vor.u32 4788187, %v249
        %v251 = vand.u32 2147483647, %v250
        %v253 = vcvt.s32.f32 %v246
        %v254 = vmul.f32 %v253, %v251
        %v255 = vxor.u32 %v254, 2147483648
        %v256 = vsel %vm173, %v255, %v254
        %v257 = vsub.s32 4, %v233
        %v258 = vsel %vm173, %v257, %v233
        %v259 = vsel %vm172, %v167, %v256
        %v260 = vsel %vm172, 0, %v258
        %v261 = vcosq.f32.pop %v259
        %v262 = vsinq.f32.pop %v259
        %vm263 = vweird.f32 %v167
        %v264 = vand.u32 %v260, 3
        %vm265 = vcmp.lt.s32.totalorder %v264, 2
        %vm266 = vcmp.eq.s32.totalorder %v264, 0
        %v267 = vxor.u32 %v262, 2147483648
        %v268 = vsel %vm266, %v261, %v267
        %vm269 = vcmp.eq.s32.totalorder %v264, 2
        %v270 = vxor.u32 %v261, 2147483648
        %v271 = vsel %vm269, %v270, %v262
        %v272 = vsel %vm265, %v268, %v271
        %v273 = vsel %vm263, nan, %v272
        %v274 = vand.u32 2147483647, %v168
        %vm275 = vcmp.le.f32.partialorder %v274, 0.7853982
        %vm276 = vcmp.lt.s32.totalorder %v168, 0
        %v277 = vand.u32 %v168, 2139095040
        %v278 = vshrl.u32 %v277, 23
        %v279 = vsub.s32 %v278, 127
        %v280 = vand.u32 2147483647, %v168
        %v281 = vand.u32 %v280, 8388607
        %v282 = vor.u32 %v281, 8388608
        %v283 = vsub.s32 0, %v282
        %v284 = vadd.s32 %v279, 1
        %vm285 = vcmp.gt.s32.totalorder %v284, 0
        %v286 = vsel %vm285, %v284, 0
        %v287 = vshrl.u32 %v286, 5
        %v288 = vand.u32 %v286, 31
        %v289 = vsub.s32 32, %v288
        %v290 = vshrl.u32 683565275, %v289
        %v291 = vshll.u32 683565275, %v288
        %v292 = vshrl.u32 2475754826, %v289
        %v293 = vor.u32 %v291, %v292
        %v294 = vshll.u32 2475754826, %v288
        %v295 = vshrl.u32 2131351028, %v289
        %v296 = vor.u32 %v294, %v295
        %v297 = vshll.u32 2131351028, %v288
        %v298 = vshrl.u32 2102212464, %v289
        %v299 = vor.u32 %v297, %v298
        %v300 = vshll.u32 2102212464, %v288
        %v301 = vshrl.u32 920167782, %v289
        %v302 = vor.u32 %v300, %v301
        %v303 = vshll.u32 920167782, %v288
        %v304 = vshrl.u32 1326507024, %v289
        %v305 = vor.u32 %v303, %v304
        %vm306 = vcmp.lt.s32.totalorder %v287, 1
        %vm307 = vcmp.lt.s32.totalorder %v287, 2
        %vm308 = vcmp.lt.s32.totalorder %v287, 3
        %vm309 = vcmp.lt.s32.totalorder %v287, 4
        %v310 = vsel %vm306, %v290, %v293
        %v311 = vsel %vm309, %v299, 2102212464
        %v312 = vsel %vm308, %v296, %v311
        %v313 = vsel %vm307, %v310, %v312
        %v314 = vsel %vm306, %v293, %v296
        %v315 = vsel %vm309, %v302, 920167782
        %v316 = vsel %vm308, %v299, %v315
        %v317 = vsel %vm307, %v314, %v316
        %v318 = vsel %vm306, %v296, %v299
        %v319 = vsel %vm309, %v305, 1326507024
        %v320 = vsel %vm308, %v302, %v319
        %v321 = vsel %vm307, %v318, %v320
        %v322 = vshll.u32 %v282, 8
        %v323 = vmul.u32.u64.compose %v322, %v321
        %v324 = vextract.low.u32 %v323
        %v325 = vextract.high.u32 %v323
        %v326 = vmul.u32.u64.compose %v322, %v317
        %v327 = vextract.low.u32 %v326
        %v328 = vextract.high.u32 %v326
        %v329 = vmul.u32 %v322, %v313
        %v330 = vadd.s32 %v325, %v327
        %vm331 = vc.u32 %v325, %v327
        %v332 = vadd.s32 %v328, 1
        %v333 = vsel %vm331, %v332, %v328
        %v334 = vadd.s32 %v329, %v333
        %v335 = vadd.s32 %v334, 536870912
        %v336 = vshrl.u32 %v335, 30
        %v337 = vshll.u32 %v336, 30
        %v338 = vsub.s32 %v334, %v337
        %vm339 = vcmp.lt.s32.totalorder %v338, 0
        %v340 = vsub.s32 0, %v338
        %v341 = vsel %vm339, %v340, %v338
        %v342 = vclz %v341
        %v343 = vsub.s32 %v342, 2
        %vm344 = vcmp.gt.s32.totalorder 0, %v343
        %v345 = vsel %vm344, 0, %v343
        %v346 = vsub.s32 32, %v345
        %v347 = vshll.u32 %v338, %v345
        %v348 = vshrl.u32 %v330, %v346
        %v349 = vor.u32 %v347, %v348
        %v350 = vsub.s32 4294967266, %v345
        %v351 = vadd.s32 %v350, 127
        %v352 = vshll.u32 %v351, 23
        %v353 = vor.u32 4788187, %v352
        %v354 = vand.u32 2147483647, %v353
        %v356 = vcvt.s32.f32 %v349
        %v357 = vmul.f32 %v356, %v354
        %v358 = vxor.u32 %v357, 2147483648
        %v359 = vsel %vm276, %v358, %v357
        %v360 = vsub.s32 4, %v336
        %v361 = vsel %vm276, %v360, %v336
        %v362 = vsel %vm275, %v168, %v359
        %v363 = vsel %vm275, 0, %v361
        %v364 = vcosq.f32.pop %v362
        %v365 = vsinq.f32.pop %v362
        %vm366 = vweird.f32 %v168
        %v367 = vand.u32 %v363, 3
        %vm368 = vcmp.lt.s32.totalorder %v367, 2
        %vm369 = vcmp.eq.s32.totalorder %v367, 0
        %v370 = vxor.u32 %v365, 2147483648
        %v371 = vsel %vm369, %v364, %v370
        %vm372 = vcmp.eq.s32.totalorder %v367, 2
        %v373 = vxor.u32 %v364, 2147483648
        %v374 = vsel %vm372, %v373, %v365
        %v375 = vsel %vm368, %v371, %v374
        %v376 = vsel %vm366, nan, %v375
        %v377 = vand.u32 2147483647, %v169
        %vm378 = vcmp.le.f32.partialorder %v377, 0.7853982
        %vm379 = vcmp.lt.s32.totalorder %v169, 0
        %v380 = vand.u32 %v169, 2139095040
        %v381 = vshrl.u32 %v380, 23
        %v382 = vsub.s32 %v381, 127
        %v383 = vand.u32 2147483647, %v169
        %v384 = vand.u32 %v383, 8388607
        %v385 = vor.u32 %v384, 8388608
        %v386 = vsub.s32 0, %v385
        %v387 = vadd.s32 %v382, 1
        %vm388 = vcmp.gt.s32.totalorder %v387, 0
        %v389 = vsel %vm388, %v387, 0
        %v390 = vshrl.u32 %v389, 5
        %v391 = vand.u32 %v389, 31
        %v392 = vsub.s32 32, %v391
        %v393 = vshrl.u32 683565275, %v392
        %v394 = vshll.u32 683565275, %v391
        %v395 = vshrl.u32 2475754826, %v392
        %v396 = vor.u32 %v394, %v395
        %v397 = vshll.u32 2475754826, %v391
        %v398 = vshrl.u32 2131351028, %v392
        %v399 = vor.u32 %v397, %v398
        %v400 = vshll.u32 2131351028, %v391
        %v401 = vshrl.u32 2102212464, %v392
        %v402 = vor.u32 %v400, %v401
        %v403 = vshll.u32 2102212464, %v391
        %v404 = vshrl.u32 920167782, %v392
        %v405 = vor.u32 %v403, %v404
        %v406 = vshll.u32 920167782, %v391
        %v407 = vshrl.u32 1326507024, %v392
        %v408 = vor.u32 %v406, %v407
        %vm409 = vcmp.lt.s32.totalorder %v390, 1
        %vm410 = vcmp.lt.s32.totalorder %v390, 2
        %vm411 = vcmp.lt.s32.totalorder %v390, 3
        %vm412 = vcmp.lt.s32.totalorder %v390, 4
        %v413 = vsel %vm409, %v393, %v396
        %v414 = vsel %vm412, %v402, 2102212464
        %v415 = vsel %vm411, %v399, %v414
        %v416 = vsel %vm410, %v413, %v415
        %v417 = vsel %vm409, %v396, %v399
        %v418 = vsel %vm412, %v405, 920167782
        %v419 = vsel %vm411, %v402, %v418
        %v420 = vsel %vm410, %v417, %v419
        %v421 = vsel %vm409, %v399, %v402
        %v422 = vsel %vm412, %v408, 1326507024
        %v423 = vsel %vm411, %v405, %v422
        %v424 = vsel %vm410, %v421, %v423
        %v425 = vshll.u32 %v385, 8
        %v426 = vmul.u32.u64.compose %v425, %v424
        %v427 = vextract.low.u32 %v426
        %v428 = vextract.high.u32 %v426
        %v429 = vmul.u32.u64.compose %v425, %v420
        %v430 = vextract.low.u32 %v429
        %v431 = vextract.high.u32 %v429
        %v432 = vmul.u32 %v425, %v416
        %v433 = vadd.s32 %v428, %v430
        %vm434 = vc.u32 %v428, %v430
        %v435 = vadd.s32 %v431, 1
        %v436 = vsel %vm434, %v435, %v431
        %v437 = vadd.s32 %v432, %v436
        %v438 = vadd.s32 %v437, 536870912
        %v439 = vshrl.u32 %v438, 30
        %v440 = vshll.u32 %v439, 30
        %v441 = vsub.s32 %v437, %v440
        %vm442 = vcmp.lt.s32.totalorder %v441, 0
        %v443 = vsub.s32 0, %v441
        %v444 = vsel %vm442, %v443, %v441
        %v445 = vclz %v444
        %v446 = vsub.s32 %v445, 2
        %vm447 = vcmp.gt.s32.totalorder 0, %v446
        %v448 = vsel %vm447, 0, %v446
        %v449 = vsub.s32 32, %v448
        %v450 = vshll.u32 %v441, %v448
        %v451 = vshrl.u32 %v433, %v449
        %v452 = vor.u32 %v450, %v451
        %v453 = vsub.s32 4294967266, %v448
        %v454 = vadd.s32 %v453, 127
        %v455 = vshll.u32 %v454, 23
        %v456 = vor.u32 4788187, %v455
        %v457 = vand.u32 2147483647, %v456
        %v459 = vcvt.s32.f32 %v452
        %v460 = vmul.f32 %v459, %v457
        %v461 = vxor.u32 %v460, 2147483648
        %v462 = vsel %vm379, %v461, %v460
        %v463 = vsub.s32 4, %v439
        %v464 = vsel %vm379, %v463, %v439
        %v465 = vsel %vm378, %v169, %v462
        %v466 = vsel %vm378, 0, %v464
        %v467 = vcosq.f32.pop %v465
        %v468 = vsinq.f32.pop %v465
        %vm469 = vweird.f32 %v169
        %v470 = vand.u32 %v466, 3
        %vm471 = vcmp.lt.s32.totalorder %v470, 2
        %vm472 = vcmp.eq.s32.totalorder %v470, 0
        %v473 = vxor.u32 %v468, 2147483648
        %v474 = vsel %vm472, %v467, %v473
        %vm475 = vcmp.eq.s32.totalorder %v470, 2
        %v476 = vxor.u32 %v467, 2147483648
        %v477 = vsel %vm475, %v476, %v468
        %v478 = vsel %vm471, %v474, %v477
        %v479 = vsel %vm469, nan, %v478
        %v480 = vand.u32 2147483647, %v170
        %vm481 = vcmp.le.f32.partialorder %v480, 0.7853982
        %vm482 = vcmp.lt.s32.totalorder %v170, 0
        %v483 = vand.u32 %v170, 2139095040
        %v484 = vshrl.u32 %v483, 23
        %v485 = vsub.s32 %v484, 127
        %v486 = vand.u32 2147483647, %v170
        %v487 = vand.u32 %v486, 8388607
        %v488 = vor.u32 %v487, 8388608
        %v489 = vsub.s32 0, %v488
        %v490 = vadd.s32 %v485, 1
        %vm491 = vcmp.gt.s32.totalorder %v490, 0
        %v492 = vsel %vm491, %v490, 0
        %v493 = vshrl.u32 %v492, 5
        %v494 = vand.u32 %v492, 31
        %v495 = vsub.s32 32, %v494
        %v496 = vshrl.u32 683565275, %v495
        %v497 = vshll.u32 683565275, %v494
        %v498 = vshrl.u32 2475754826, %v495
        %v499 = vor.u32 %v497, %v498
        %v500 = vshll.u32 2475754826, %v494
        %v501 = vshrl.u32 2131351028, %v495
        %v502 = vor.u32 %v500, %v501
        %v503 = vshll.u32 2131351028, %v494
        %v504 = vshrl.u32 2102212464, %v495
        %v505 = vor.u32 %v503, %v504
        %v506 = vshll.u32 2102212464, %v494
        %v507 = vshrl.u32 920167782, %v495
        %v508 = vor.u32 %v506, %v507
        %v509 = vshll.u32 920167782, %v494
        %v510 = vshrl.u32 1326507024, %v495
        %v511 = vor.u32 %v509, %v510
        %vm512 = vcmp.lt.s32.totalorder %v493, 1
        %vm513 = vcmp.lt.s32.totalorder %v493, 2
        %vm514 = vcmp.lt.s32.totalorder %v493, 3
        %vm515 = vcmp.lt.s32.totalorder %v493, 4
        %v516 = vsel %vm512, %v496, %v499
        %v517 = vsel %vm515, %v505, 2102212464
        %v518 = vsel %vm514, %v502, %v517
        %v519 = vsel %vm513, %v516, %v518
        %v520 = vsel %vm512, %v499, %v502
        %v521 = vsel %vm515, %v508, 920167782
        %v522 = vsel %vm514, %v505, %v521
        %v523 = vsel %vm513, %v520, %v522
        %v524 = vsel %vm512, %v502, %v505
        %v525 = vsel %vm515, %v511, 1326507024
        %v526 = vsel %vm514, %v508, %v525
        %v527 = vsel %vm513, %v524, %v526
        %v528 = vshll.u32 %v488, 8
        %v529 = vmul.u32.u64.compose %v528, %v527
        %v530 = vextract.low.u32 %v529
        %v531 = vextract.high.u32 %v529
        %v532 = vmul.u32.u64.compose %v528, %v523
        %v533 = vextract.low.u32 %v532
        %v534 = vextract.high.u32 %v532
        %v535 = vmul.u32 %v528, %v519
        %v536 = vadd.s32 %v531, %v533
        %vm537 = vc.u32 %v531, %v533
        %v538 = vadd.s32 %v534, 1
        %v539 = vsel %vm537, %v538, %v534
        %v540 = vadd.s32 %v535, %v539
        %v541 = vadd.s32 %v540, 536870912
        %v542 = vshrl.u32 %v541, 30
        %v543 = vshll.u32 %v542, 30
        %v544 = vsub.s32 %v540, %v543
        %vm545 = vcmp.lt.s32.totalorder %v544, 0
        %v546 = vsub.s32 0, %v544
        %v547 = vsel %vm545, %v546, %v544
        %v548 = vclz %v547
        %v549 = vsub.s32 %v548, 2
        %vm550 = vcmp.gt.s32.totalorder 0, %v549
        %v551 = vsel %vm550, 0, %v549
        %v552 = vsub.s32 32, %v551
        %v553 = vshll.u32 %v544, %v551
        %v554 = vshrl.u32 %v536, %v552
        %v555 = vor.u32 %v553, %v554
        %v556 = vsub.s32 4294967266, %v551
        %v557 = vadd.s32 %v556, 127
        %v558 = vshll.u32 %v557, 23
        %v559 = vor.u32 4788187, %v558
        %v560 = vand.u32 2147483647, %v559
        %v562 = vcvt.s32.f32 %v555
        %v563 = vmul.f32 %v562, %v560
        %v564 = vxor.u32 %v563, 2147483648
        %v565 = vsel %vm482, %v564, %v563
        %v566 = vsub.s32 4, %v542
        %v567 = vsel %vm482, %v566, %v542
        %v568 = vsel %vm481, %v170, %v565
        %v569 = vsel %vm481, 0, %v567
        %v570 = vcosq.f32.pop %v568
        %v571 = vsinq.f32.pop %v568
        %vm572 = vweird.f32 %v170
        %v573 = vand.u32 %v569, 3
        %vm574 = vcmp.lt.s32.totalorder %v573, 2
        %vm575 = vcmp.eq.s32.totalorder %v573, 0
        %v576 = vxor.u32 %v571, 2147483648
        %v577 = vsel %vm575, %v570, %v576
        %vm578 = vcmp.eq.s32.totalorder %v573, 2
        %v579 = vxor.u32 %v570, 2147483648
        %v580 = vsel %vm578, %v579, %v571
        %v581 = vsel %vm574, %v577, %v580
        %v582 = vsel %vm572, nan, %v581
        %v583 = vand.u32 2147483647, %v167
        %vm584 = vcmp.le.f32.partialorder %v583, 0.7853982
        %vm585 = vcmp.lt.s32.totalorder %v167, 0
        %v586 = vand.u32 %v167, 2139095040
        %v587 = vshrl.u32 %v586, 23
        %v588 = vsub.s32 %v587, 127
        %v589 = vand.u32 2147483647, %v167
        %v590 = vand.u32 %v589, 8388607
        %v591 = vor.u32 %v590, 8388608
        %v592 = vsub.s32 0, %v591
        %v593 = vadd.s32 %v588, 1
        %vm594 = vcmp.gt.s32.totalorder %v593, 0
        %v595 = vsel %vm594, %v593, 0
        %v596 = vshrl.u32 %v595, 5
        %v597 = vand.u32 %v595, 31
        %v598 = vsub.s32 32, %v597
        %v599 = vshrl.u32 683565275, %v598
        %v600 = vshll.u32 683565275, %v597
        %v601 = vshrl.u32 2475754826, %v598
        %v602 = vor.u32 %v600, %v601
        %v603 = vshll.u32 2475754826, %v597
        %v604 = vshrl.u32 2131351028, %v598
        %v605 = vor.u32 %v603, %v604
        %v606 = vshll.u32 2131351028, %v597
        %v607 = vshrl.u32 2102212464, %v598
        %v608 = vor.u32 %v606, %v607
        %v609 = vshll.u32 2102212464, %v597
        %v610 = vshrl.u32 920167782, %v598
        %v611 = vor.u32 %v609, %v610
        %v612 = vshll.u32 920167782, %v597
        %v613 = vshrl.u32 1326507024, %v598
        %v614 = vor.u32 %v612, %v613
        %vm615 = vcmp.lt.s32.totalorder %v596, 1
        %vm616 = vcmp.lt.s32.totalorder %v596, 2
        %vm617 = vcmp.lt.s32.totalorder %v596, 3
        %vm618 = vcmp.lt.s32.totalorder %v596, 4
        %v619 = vsel %vm615, %v599, %v602
        %v620 = vsel %vm618, %v608, 2102212464
        %v621 = vsel %vm617, %v605, %v620
        %v622 = vsel %vm616, %v619, %v621
        %v623 = vsel %vm615, %v602, %v605
        %v624 = vsel %vm618, %v611, 920167782
        %v625 = vsel %vm617, %v608, %v624
        %v626 = vsel %vm616, %v623, %v625
        %v627 = vsel %vm615, %v605, %v608
        %v628 = vsel %vm618, %v614, 1326507024
        %v629 = vsel %vm617, %v611, %v628
        %v630 = vsel %vm616, %v627, %v629
        %v631 = vshll.u32 %v591, 8
        %v632 = vmul.u32.u64.compose %v631, %v630
        %v633 = vextract.low.u32 %v632
        %v634 = vextract.high.u32 %v632
        %v635 = vmul.u32.u64.compose %v631, %v626
        %v636 = vextract.low.u32 %v635
        %v637 = vextract.high.u32 %v635
        %v638 = vmul.u32 %v631, %v622
        %v639 = vadd.s32 %v634, %v636
        %vm640 = vc.u32 %v634, %v636
        %v641 = vadd.s32 %v637, 1
        %v642 = vsel %vm640, %v641, %v637
        %v643 = vadd.s32 %v638, %v642
        %v644 = vadd.s32 %v643, 536870912
        %v645 = vshrl.u32 %v644, 30
        %v646 = vshll.u32 %v645, 30
        %v647 = vsub.s32 %v643, %v646
        %vm648 = vcmp.lt.s32.totalorder %v647, 0
        %v649 = vsub.s32 0, %v647
        %v650 = vsel %vm648, %v649, %v647
        %v651 = vclz %v650
        %v652 = vsub.s32 %v651, 2
        %vm653 = vcmp.gt.s32.totalorder 0, %v652
        %v654 = vsel %vm653, 0, %v652
        %v655 = vsub.s32 32, %v654
        %v656 = vshll.u32 %v647, %v654
        %v657 = vshrl.u32 %v639, %v655
        %v658 = vor.u32 %v656, %v657
        %v659 = vsub.s32 4294967266, %v654
        %v660 = vadd.s32 %v659, 127
        %v661 = vshll.u32 %v660, 23
        %v662 = vor.u32 4788187, %v661
        %v663 = vand.u32 2147483647, %v662
        %v665 = vcvt.s32.f32 %v658
        %v666 = vmul.f32 %v665, %v663
        %v667 = vxor.u32 %v666, 2147483648
        %v668 = vsel %vm585, %v667, %v666
        %v669 = vsub.s32 4, %v645
        %v670 = vsel %vm585, %v669, %v645
        %v671 = vsel %vm584, %v167, %v668
        %v672 = vsel %vm584, 0, %v670
        %v673 = vcosq.f32.pop %v671
        %v674 = vsinq.f32.pop %v671
        %vm675 = vweird.f32 %v167
        %v676 = vadd.s32 %v672, 3
        %v677 = vand.u32 %v676, 3
        %vm678 = vcmp.lt.s32.totalorder %v677, 2
        %vm679 = vcmp.eq.s32.totalorder %v677, 0
        %v680 = vxor.u32 %v674, 2147483648
        %v681 = vsel %vm679, %v673, %v680
        %vm682 = vcmp.eq.s32.totalorder %v677, 2
        %v683 = vxor.u32 %v673, 2147483648
        %v684 = vsel %vm682, %v683, %v674
        %v685 = vsel %vm678, %v681, %v684
        %v686 = vsel %vm675, nan, %v685
        %v687 = vand.u32 2147483647, %v168
        %vm688 = vcmp.le.f32.partialorder %v687, 0.7853982
        %vm689 = vcmp.lt.s32.totalorder %v168, 0
        %v690 = vand.u32 %v168, 2139095040
        %v691 = vshrl.u32 %v690, 23
        %v692 = vsub.s32 %v691, 127
        %v693 = vand.u32 2147483647, %v168
        %v694 = vand.u32 %v693, 8388607
        %v695 = vor.u32 %v694, 8388608
        %v696 = vsub.s32 0, %v695
        %v697 = vadd.s32 %v692, 1
        %vm698 = vcmp.gt.s32.totalorder %v697, 0
        %v699 = vsel %vm698, %v697, 0
        %v700 = vshrl.u32 %v699, 5
        %v701 = vand.u32 %v699, 31
        %v702 = vsub.s32 32, %v701
        %v703 = vshrl.u32 683565275, %v702
        %v704 = vshll.u32 683565275, %v701
        %v705 = vshrl.u32 2475754826, %v702
        %v706 = vor.u32 %v704, %v705
        %v707 = vshll.u32 2475754826, %v701
        %v708 = vshrl.u32 2131351028, %v702
        %v709 = vor.u32 %v707, %v708
        %v710 = vshll.u32 2131351028, %v701
        %v711 = vshrl.u32 2102212464, %v702
        %v712 = vor.u32 %v710, %v711
        %v713 = vshll.u32 2102212464, %v701
        %v714 = vshrl.u32 920167782, %v702
        %v715 = vor.u32 %v713, %v714
        %v716 = vshll.u32 920167782, %v701
        %v717 = vshrl.u32 1326507024, %v702
        %v718 = vor.u32 %v716, %v717
        %vm719 = vcmp.lt.s32.totalorder %v700, 1
        %vm720 = vcmp.lt.s32.totalorder %v700, 2
        %vm721 = vcmp.lt.s32.totalorder %v700, 3
        %vm722 = vcmp.lt.s32.totalorder %v700, 4
        %v723 = vsel %vm719, %v703, %v706
        %v724 = vsel %vm722, %v712, 2102212464
        %v725 = vsel %vm721, %v709, %v724
        %v726 = vsel %vm720, %v723, %v725
        %v727 = vsel %vm719, %v706, %v709
        %v728 = vsel %vm722, %v715, 920167782
        %v729 = vsel %vm721, %v712, %v728
        %v730 = vsel %vm720, %v727, %v729
        %v731 = vsel %vm719, %v709, %v712
        %v732 = vsel %vm722, %v718, 1326507024
        %v733 = vsel %vm721, %v715, %v732
        %v734 = vsel %vm720, %v731, %v733
        %v735 = vshll.u32 %v695, 8
        %v736 = vmul.u32.u64.compose %v735, %v734
        %v737 = vextract.low.u32 %v736
        %v738 = vextract.high.u32 %v736
        %v739 = vmul.u32.u64.compose %v735, %v730
        %v740 = vextract.low.u32 %v739
        %v741 = vextract.high.u32 %v739
        %v742 = vmul.u32 %v735, %v726
        %v743 = vadd.s32 %v738, %v740
        %vm744 = vc.u32 %v738, %v740
        %v745 = vadd.s32 %v741, 1
        %v746 = vsel %vm744, %v745, %v741
        %v747 = vadd.s32 %v742, %v746
        %v748 = vadd.s32 %v747, 536870912
        %v749 = vshrl.u32 %v748, 30
        %v750 = vshll.u32 %v749, 30
        %v751 = vsub.s32 %v747, %v750
        %vm752 = vcmp.lt.s32.totalorder %v751, 0
        %v753 = vsub.s32 0, %v751
        %v754 = vsel %vm752, %v753, %v751
        %v755 = vclz %v754
        %v756 = vsub.s32 %v755, 2
        %vm757 = vcmp.gt.s32.totalorder 0, %v756
        %v758 = vsel %vm757, 0, %v756
        %v759 = vsub.s32 32, %v758
        %v760 = vshll.u32 %v751, %v758
        %v761 = vshrl.u32 %v743, %v759
        %v762 = vor.u32 %v760, %v761
        %v763 = vsub.s32 4294967266, %v758
        %v764 = vadd.s32 %v763, 127
        %v765 = vshll.u32 %v764, 23
        %v766 = vor.u32 4788187, %v765
        %v767 = vand.u32 2147483647, %v766
        %v769 = vcvt.s32.f32 %v762
        %v770 = vmul.f32 %v769, %v767
        %v771 = vxor.u32 %v770, 2147483648
        %v772 = vsel %vm689, %v771, %v770
        %v773 = vsub.s32 4, %v749
        %v774 = vsel %vm689, %v773, %v749
        %v775 = vsel %vm688, %v168, %v772
        %v776 = vsel %vm688, 0, %v774
        %v777 = vcosq.f32.pop %v775
        %v778 = vsinq.f32.pop %v775
        %vm779 = vweird.f32 %v168
        %v780 = vadd.s32 %v776, 3
        %v781 = vand.u32 %v780, 3
        %vm782 = vcmp.lt.s32.totalorder %v781, 2
        %vm783 = vcmp.eq.s32.totalorder %v781, 0
        %v784 = vxor.u32 %v778, 2147483648
        %v785 = vsel %vm783, %v777, %v784
        %vm786 = vcmp.eq.s32.totalorder %v781, 2
        %v787 = vxor.u32 %v777, 2147483648
        %v788 = vsel %vm786, %v787, %v778
        %v789 = vsel %vm782, %v785, %v788
        %v790 = vsel %vm779, nan, %v789
        %v791 = vand.u32 2147483647, %v169
        %vm792 = vcmp.le.f32.partialorder %v791, 0.7853982
        %vm793 = vcmp.lt.s32.totalorder %v169, 0
        %v794 = vand.u32 %v169, 2139095040
        %v795 = vshrl.u32 %v794, 23
        %v796 = vsub.s32 %v795, 127
        %v797 = vand.u32 2147483647, %v169
        %v798 = vand.u32 %v797, 8388607
        %v799 = vor.u32 %v798, 8388608
        %v800 = vsub.s32 0, %v799
        %v801 = vadd.s32 %v796, 1
        %vm802 = vcmp.gt.s32.totalorder %v801, 0
        %v803 = vsel %vm802, %v801, 0
        %v804 = vshrl.u32 %v803, 5
        %v805 = vand.u32 %v803, 31
        %v806 = vsub.s32 32, %v805
        %v807 = vshrl.u32 683565275, %v806
        %v808 = vshll.u32 683565275, %v805
        %v809 = vshrl.u32 2475754826, %v806
        %v810 = vor.u32 %v808, %v809
        %v811 = vshll.u32 2475754826, %v805
        %v812 = vshrl.u32 2131351028, %v806
        %v813 = vor.u32 %v811, %v812
        %v814 = vshll.u32 2131351028, %v805
        %v815 = vshrl.u32 2102212464, %v806
        %v816 = vor.u32 %v814, %v815
        %v817 = vshll.u32 2102212464, %v805
        %v818 = vshrl.u32 920167782, %v806
        %v819 = vor.u32 %v817, %v818
        %v820 = vshll.u32 920167782, %v805
        %v821 = vshrl.u32 1326507024, %v806
        %v822 = vor.u32 %v820, %v821
        %vm823 = vcmp.lt.s32.totalorder %v804, 1
        %vm824 = vcmp.lt.s32.totalorder %v804, 2
        %vm825 = vcmp.lt.s32.totalorder %v804, 3
        %vm826 = vcmp.lt.s32.totalorder %v804, 4
        %v827 = vsel %vm823, %v807, %v810
        %v828 = vsel %vm826, %v816, 2102212464
        %v829 = vsel %vm825, %v813, %v828
        %v830 = vsel %vm824, %v827, %v829
        %v831 = vsel %vm823, %v810, %v813
        %v832 = vsel %vm826, %v819, 920167782
        %v833 = vsel %vm825, %v816, %v832
        %v834 = vsel %vm824, %v831, %v833
        %v835 = vsel %vm823, %v813, %v816
        %v836 = vsel %vm826, %v822, 1326507024
        %v837 = vsel %vm825, %v819, %v836
        %v838 = vsel %vm824, %v835, %v837
        %v839 = vshll.u32 %v799, 8
        %v840 = vmul.u32.u64.compose %v839, %v838
        %v841 = vextract.low.u32 %v840
        %v842 = vextract.high.u32 %v840
        %v843 = vmul.u32.u64.compose %v839, %v834
        %v844 = vextract.low.u32 %v843
        %v845 = vextract.high.u32 %v843
        %v846 = vmul.u32 %v839, %v830
        %v847 = vadd.s32 %v842, %v844
        %vm848 = vc.u32 %v842, %v844
        %v849 = vadd.s32 %v845, 1
        %v850 = vsel %vm848, %v849, %v845
        %v851 = vadd.s32 %v846, %v850
        %v852 = vadd.s32 %v851, 536870912
        %v853 = vshrl.u32 %v852, 30
        %v854 = vshll.u32 %v853, 30
        %v855 = vsub.s32 %v851, %v854
        %vm856 = vcmp.lt.s32.totalorder %v855, 0
        %v857 = vsub.s32 0, %v855
        %v858 = vsel %vm856, %v857, %v855
        %v859 = vclz %v858
        %v860 = vsub.s32 %v859, 2
        %vm861 = vcmp.gt.s32.totalorder 0, %v860
        %v862 = vsel %vm861, 0, %v860
        %v863 = vsub.s32 32, %v862
        %v864 = vshll.u32 %v855, %v862
        %v865 = vshrl.u32 %v847, %v863
        %v866 = vor.u32 %v864, %v865
        %v867 = vsub.s32 4294967266, %v862
        %v868 = vadd.s32 %v867, 127
        %v869 = vshll.u32 %v868, 23
        %v870 = vor.u32 4788187, %v869
        %v871 = vand.u32 2147483647, %v870
        %v873 = vcvt.s32.f32 %v866
        %v874 = vmul.f32 %v873, %v871
        %v875 = vxor.u32 %v874, 2147483648
        %v876 = vsel %vm793, %v875, %v874
        %v877 = vsub.s32 4, %v853
        %v878 = vsel %vm793, %v877, %v853
        %v879 = vsel %vm792, %v169, %v876
        %v880 = vsel %vm792, 0, %v878
        %v881 = vcosq.f32.pop %v879
        %v882 = vsinq.f32.pop %v879
        %vm883 = vweird.f32 %v169
        %v884 = vadd.s32 %v880, 3
        %v885 = vand.u32 %v884, 3
        %vm886 = vcmp.lt.s32.totalorder %v885, 2
        %vm887 = vcmp.eq.s32.totalorder %v885, 0
        %v888 = vxor.u32 %v882, 2147483648
        %v889 = vsel %vm887, %v881, %v888
        %vm890 = vcmp.eq.s32.totalorder %v885, 2
        %v891 = vxor.u32 %v881, 2147483648
        %v892 = vsel %vm890, %v891, %v882
        %v893 = vsel %vm886, %v889, %v892
        %v894 = vsel %vm883, nan, %v893
        %v895 = vand.u32 2147483647, %v170
        %vm896 = vcmp.le.f32.partialorder %v895, 0.7853982
        %vm897 = vcmp.lt.s32.totalorder %v170, 0
        %v898 = vand.u32 %v170, 2139095040
        %v899 = vshrl.u32 %v898, 23
        %v900 = vsub.s32 %v899, 127
        %v901 = vand.u32 2147483647, %v170
        %v902 = vand.u32 %v901, 8388607
        %v903 = vor.u32 %v902, 8388608
        %v904 = vsub.s32 0, %v903
        %v905 = vadd.s32 %v900, 1
        %vm906 = vcmp.gt.s32.totalorder %v905, 0
        %v907 = vsel %vm906, %v905, 0
        %v908 = vshrl.u32 %v907, 5
        %v909 = vand.u32 %v907, 31
        %v910 = vsub.s32 32, %v909
        %v911 = vshrl.u32 683565275, %v910
        %v912 = vshll.u32 683565275, %v909
        %v913 = vshrl.u32 2475754826, %v910
        %v914 = vor.u32 %v912, %v913
        %v915 = vshll.u32 2475754826, %v909
        %v916 = vshrl.u32 2131351028, %v910
        %v917 = vor.u32 %v915, %v916
        %v918 = vshll.u32 2131351028, %v909
        %v919 = vshrl.u32 2102212464, %v910
        %v920 = vor.u32 %v918, %v919
        %v921 = vshll.u32 2102212464, %v909
        %v922 = vshrl.u32 920167782, %v910
        %v923 = vor.u32 %v921, %v922
        %v924 = vshll.u32 920167782, %v909
        %v925 = vshrl.u32 1326507024, %v910
        %v926 = vor.u32 %v924, %v925
        %vm927 = vcmp.lt.s32.totalorder %v908, 1
        %vm928 = vcmp.lt.s32.totalorder %v908, 2
        %vm929 = vcmp.lt.s32.totalorder %v908, 3
        %vm930 = vcmp.lt.s32.totalorder %v908, 4
        %v931 = vsel %vm927, %v911, %v914
        %v932 = vsel %vm930, %v920, 2102212464
        %v933 = vsel %vm929, %v917, %v932
        %v934 = vsel %vm928, %v931, %v933
        %v935 = vsel %vm927, %v914, %v917
        %v936 = vsel %vm930, %v923, 920167782
        %v937 = vsel %vm929, %v920, %v936
        %v938 = vsel %vm928, %v935, %v937
        %v939 = vsel %vm927, %v917, %v920
        %v940 = vsel %vm930, %v926, 1326507024
        %v941 = vsel %vm929, %v923, %v940
        %v942 = vsel %vm928, %v939, %v941
        %v943 = vshll.u32 %v903, 8
        %v944 = vmul.u32.u64.compose %v943, %v942
        %v945 = vextract.low.u32 %v944
        %v946 = vextract.high.u32 %v944
        %v947 = vmul.u32.u64.compose %v943, %v938
        %v948 = vextract.low.u32 %v947
        %v949 = vextract.high.u32 %v947
        %v950 = vmul.u32 %v943, %v934
        %v951 = vadd.s32 %v946, %v948
        %vm952 = vc.u32 %v946, %v948
        %v953 = vadd.s32 %v949, 1
        %v954 = vsel %vm952, %v953, %v949
        %v955 = vadd.s32 %v950, %v954
        %v956 = vadd.s32 %v955, 536870912
        %v957 = vshrl.u32 %v956, 30
        %v958 = vshll.u32 %v957, 30
        %v959 = vsub.s32 %v955, %v958
        %vm960 = vcmp.lt.s32.totalorder %v959, 0
        %v961 = vsub.s32 0, %v959
        %v962 = vsel %vm960, %v961, %v959
        %v963 = vclz %v962
        %v964 = vsub.s32 %v963, 2
        %vm965 = vcmp.gt.s32.totalorder 0, %v964
        %v966 = vsel %vm965, 0, %v964
        %v967 = vsub.s32 32, %v966
        %v968 = vshll.u32 %v959, %v966
        %v969 = vshrl.u32 %v951, %v967
        %v970 = vor.u32 %v968, %v969
        %v971 = vsub.s32 4294967266, %v966
        %v972 = vadd.s32 %v971, 127
        %v973 = vshll.u32 %v972, 23
        %v974 = vor.u32 4788187, %v973
        %v975 = vand.u32 2147483647, %v974
        %v977 = vcvt.s32.f32 %v970
        %v978 = vmul.f32 %v977, %v975
        %v979 = vxor.u32 %v978, 2147483648
        %v980 = vsel %vm897, %v979, %v978
        %v981 = vsub.s32 4, %v957
        %v982 = vsel %vm897, %v981, %v957
        %v983 = vsel %vm896, %v170, %v980
        %v984 = vsel %vm896, 0, %v982
        %v985 = vcosq.f32.pop %v983
        %v986 = vsinq.f32.pop %v983
        %vm987 = vweird.f32 %v170
        %v988 = vadd.s32 %v984, 3
        %v989 = vand.u32 %v988, 3
        %vm990 = vcmp.lt.s32.totalorder %v989, 2
        %vm991 = vcmp.eq.s32.totalorder %v989, 0
        %v992 = vxor.u32 %v986, 2147483648
        %v993 = vsel %vm991, %v985, %v992
        %vm994 = vcmp.eq.s32.totalorder %v989, 2
        %v995 = vxor.u32 %v985, 2147483648
        %v996 = vsel %vm994, %v995, %v986
        %v997 = vsel %vm990, %v993, %v996
        %v998 = vsel %vm987, nan, %v997
        %v1000 = vlaneseq
        %v1001 = vshrl.u32 %v1000, 7
        %v1002 = vsub.s32 0, %v1001
        %v1003 = vrot.slane %v135, %v1002
        %v1004 = vlaneseq
        %v1005 = vshrl.u32 %v1004, 7
        %v1006 = vsub.s32 1, %v1005
        %v1007 = vrot.slane %v135, %v1006
        %v1008 = vlaneseq
        %v1009 = vshrl.u32 %v1008, 7
        %v1010 = vsub.s32 2, %v1009
        %v1011 = vrot.slane %v135, %v1010
        %v1012 = vlaneseq
        %v1013 = vshrl.u32 %v1012, 7
        %v1014 = vsub.s32 3, %v1013
        %v1015 = vrot.slane %v135, %v1014
        %v1024 = vrot.slane %v273, 7
        %v1025 = vrot.slane %v376, 7
        %v1026 = vrot.slane %v479, 7
        %v1027 = vrot.slane %v582, 7
        %v1036 = vrot.slane %v686, 2
        %v1037 = vrot.slane %v790, 2
        %v1038 = vrot.slane %v894, 2
        %v1039 = vrot.slane %v998, 2
        %vm1044 = vcmask 1040384
        %v1045 = vsel %vm1044, %v1003, %v1024
        %v1046 = vsel %vm1044, %v1007, %v1025
        %v1047 = vsel %vm1044, %v1011, %v1026
        %v1048 = vsel %vm1044, %v1015, %v1027
        %vm1049 = vcmask 1045504
        %v1050 = vsel %vm1049, %v1045, %v1036
        %v1051 = vsel %vm1049, %v1046, %v1037
        %v1052 = vsel %vm1049, %v1047, %v1038
        %v1053 = vsel %vm1049, %v1048, %v1039
        %vm1054 = vcmask 1042432
        %v1055 = vsel %vm1054, %v1036, 1.0
        %v1056 = vsel %vm1054, %v1037, 1.0
        %v1057 = vsel %vm1054, %v1038, 1.0
        %v1058 = vsel %vm1054, %v1039, 1.0
        %1059 = vst [vmem:[%s132] sm:$0xff] %v1050
        %1060 = vst [vmem:[%s132 + $0x8] sm:$0xff] %v1051
        %1061 = vst [vmem:[%s132 + $0x10] sm:$0xff] %v1052
        %1062 = vst [vmem:[%s132 + $0x18] sm:$0xff] %v1053
        %1063 = vst [vmem:[%s132 + $0x20] sm:$0xf] %v1055
        %1064 = vst [vmem:[%s132 + $0x28] sm:$0xf] %v1056
        %1065 = vst [vmem:[%s132 + $0x30] sm:$0xf] %v1057
        %1066 = vst [vmem:[%s132 + $0x38] sm:$0xf] %v1058
        %s1067 = sand.u32 %s52, 1
        %s1068 = scalar_lea.sflag [#allocation4], %s1067
        %s1069 = sand.u32 %s52, 1
        %s1070 = smul.addr %s1069, 64
        %s1071 = scalar_lea.vmem [#allocation5], %s1070
        // Predicated region
        $region29: #{fourier_embedding.1} parent=23 // pred_check
          %p1072 = pneg %p62
        $region30: #{fourier_embedding.1} parent=23 // pred_check_branch
          %1074 = sbr.rel (%p1072) target = $region32
        $region31: #{fourier_embedding.1} parent=23 // pred_region
          %s1075 = smul.u32 4, %s18
          %s1077 = ssub.s32 1024, 1024
          %1078 = vsyncadd %s1068, %s1077
          %s1079 = smul.addr %s1075, 128
          %s1080 = scalar_lea.hbm %s1, %s1079
          %s1081 = sshll.u32 %s1071, 4
          %s1082 = int_to_ptr.vmem [resolvable:$true] %s1081
          %1087 = dma.vmem_to_hbm [thread:$0]  %s1082, 1024, %s1080, %s1068, 512, 1024, 32
        $region32: #{fourier_embedding.1} parent=23 // pred_fallthru
          _
      $region24: #{fourier_embedding.1} parent=5 // pred_fallthru
        _
      %p1088 = scmp.le.s32.totalorder 2, %s13
      // Predicated region
      $region33: #{fourier_embedding.1} parent=5 // pred_check
        %p1089 = pneg %p1088
      $region34: #{fourier_embedding.1} parent=5 // pred_check_branch
        %1091 = sbr.rel (%p1089) target = $region36
      $region35: #{fourier_embedding.1} parent=5 // pred_region
        %s1092 = ssub.s32 %s13, 2
        // Predicated region
        $region37: #{fourier_embedding.1} parent=35 // pred_check
          %p1093 = pneg %p68
        $region38: #{fourier_embedding.1} parent=35 // pred_check_branch
          %1095 = sbr.rel (%p1093) target = $region40
        $region39: #{fourier_embedding.1} parent=35 // pred_region
          %s1096 = sand.u32 %s53, 1
          %s1097 = scalar_lea.sflag [#allocation4], %s1096
          %s1098 = sand.u32 %s53, 1
          %s1099 = smul.addr %s1098, 64
          %s1100 = scalar_lea.vmem [#allocation5], %s1099
          %1101 = dma.done %s1097, 1024
        $region40: #{fourier_embedding.1} parent=35 // pred_fallthru
          _
      $region36: #{fourier_embedding.1} parent=5 // pred_fallthru
        _
    $region6: #{fourier_embedding.1} parent=1 // loop_footer
      %s17 = sadd.s32 1, %s13
    $region7: #{fourier_embedding.1} parent=1 // loop_footer_branch
      %12 = sbr.rel target = $region3
    $region8: #{fourier_embedding.1} parent=1 // loop_exit
      _
    %1102 = vsyncpa [#allocation3], 1
    %s1103 = scalar_lea.sflag [#allocation3], 1
    %1104 = vsyncpa %s1103, 1
    %1105 = vsyncpa [#allocation4], 1
    %s1106 = scalar_lea.sflag [#allocation4], 1
    %1107 = vsyncpa %s1106, 1

</llo_original>
